<compile_context>
chip_gen: v5e
topology: v5e:2x2
jax: 0.10.0
libtpu: 0.0.40
codegen_flags: <defaults>
</compile_context>

<pallas_src>
import math

import jax
import jax.numpy as jnp
from jax.experimental import pallas as pl
from jax.experimental.pallas import tpu as pltpu


def _build_pe_table(d_model: int, max_len: int = 500,
                    dtype=jnp.float32) -> jnp.ndarray:
    """Same math as the PyTorch __init__; cast to the model dtype once here."""
    position = jnp.arange(max_len, dtype=jnp.float32)[:, None]           # (max_len, 1)
    div_term = jnp.exp(
        jnp.arange(0, d_model, 2, dtype=jnp.float32) * (-math.log(10000.0) / d_model)
    )                                                                    # (d_model/2,)
    pe = jnp.zeros((max_len, d_model), dtype=jnp.float32)
    pe = pe.at[:, 0::2].set(jnp.sin(position * div_term))
    pe = pe.at[:, 1::2].set(jnp.cos(position * div_term))
    return pe.astype(dtype)                                              # (max_len, d_model)


def _pe_add_kernel(x_ref, pe_ref, o_ref):
    # x_ref: (tb, ts, D); pe_ref: (ts, D) -> broadcast add over the batch-tile dim.
    o_ref[...] = (x_ref[...] + pe_ref[...]).astype(o_ref.dtype)


_TARGET_BLOCK_BYTES = 4 << 20       # per x block; 2x(x)+2x(out)+2x(pe) <= ~24 MiB pipelined
_MEGACORE_SPLIT_BYTES = 512 << 10   # above this, force >= 2 grid steps (v7x dual-TC)


def _sublane(itemsize: int) -> int:
    # 8 rows/vreg for f32, 16 for bf16, 32 for int8.
    return max(8, 32 // max(itemsize, 1))


def _choose_tiles(B: int, S: int, D: int, itemsize: int):
    """Pick (tb, ts) so each block is ~<=4 MiB and v7x gets >=2 parallel steps."""
    sub = _sublane(itemsize)
    row_bytes = D * itemsize                       # bytes per sequence position

    # ts: tile along S (full S if it fits, else a sublane multiple).
    if S * row_bytes <= _TARGET_BLOCK_BYTES:
        ts = S
    else:
        ts = max(1, _TARGET_BLOCK_BYTES // row_bytes)
        ts = max(sub, (ts // sub) * sub)
        ts = min(ts, S)

    # tb: tile along B so the block stays under the byte target.
    block_bytes = ts * row_bytes
    tb = max(1, _TARGET_BLOCK_BYTES // block_bytes)
    tb = min(tb, B)

    # v7x megacore: guarantee >= 2 parallel grid steps for non-trivial sizes.
    total = B * S * row_bytes
    if total > _MEGACORE_SPLIT_BYTES and pl.cdiv(B, tb) * pl.cdiv(S, ts) < 2:
        if B >= 2:
            tb = (B + 1) // 2                      # -> exactly 2 batch tiles
        elif S > sub:
            ts = max(sub, ((S // 2) // sub) * sub)  # -> >= 2 seq tiles
    return tb, ts


def _vmem_limit_bytes() -> int:
    """Generation-aware scoped-VMEM limit (half of physical, capped at 64 MiB)."""
    cap = 64 << 20
    try:
        info = pltpu.get_tpu_info()
        cap = int(getattr(info, "vmem_capacity_bytes", cap)) or cap
    except Exception:
        pass
    return min(cap // 2, 64 << 20)


def positional_encoding_forward(x: jnp.ndarray, pe_table: jnp.ndarray,
                                *, tb: int | None = None,
                                ts: int | None = None) -> jnp.ndarray:
    """x: (B, S, D); pe_table: (max_len, D) pre-cast at init. Returns x + pe[:S]."""
    B, S, D = x.shape
    max_len = pe_table.shape[0]
    if S > max_len:
        raise ValueError(f"sequence length {S} exceeds positional-encoding max_len {max_len}")

    pe = pe_table[:S]                               # constant slice; folded away under jit
    if pe.dtype != x.dtype:                         # normally a no-op (cast done at init)
        pe = pe.astype(x.dtype)

    itemsize = jnp.dtype(x.dtype).itemsize
    auto_tb, auto_ts = _choose_tiles(B, S, D, itemsize)
    tb = tb if tb is not None else auto_tb
    ts = ts if ts is not None else auto_ts
    grid = (pl.cdiv(B, tb), pl.cdiv(S, ts))

    out = pl.pallas_call(
        _pe_add_kernel,
        out_shape=jax.ShapeDtypeStruct((B, S, D), x.dtype),
        grid=grid,
        in_specs=[
            pl.BlockSpec((tb, ts, D), lambda i, j: (i, j, 0)),   # x, natural layout
            pl.BlockSpec((ts, D), lambda i, j: (j, 0)),          # pe, tiled along S only
        ],
        out_specs=pl.BlockSpec((tb, ts, D), lambda i, j: (i, j, 0)),
        compiler_params=pltpu.CompilerParams(
            dimension_semantics=("parallel", "parallel"),        # fully independent tiles
            vmem_limit_bytes=_vmem_limit_bytes(),
        ),
        cost_estimate=pl.CostEstimate(
            flops=B * S * D,
            transcendentals=0,
            bytes_accessed=(2 * B * S * D + S * D) * itemsize,
        ),
    )(x, pe)
    return out


if __name__ == "__main__":
    max_len = 500

    # Demo shape consistent with the module: batch=2, seq=8, d_model=32.
    B, S, D = 2, 8, 32
    key = jax.random.PRNGKey(0)
    x = jax.random.normal(key, (B, S, D), dtype=jnp.float32)
    pe_table = _build_pe_table(D, max_len)          # "module init": built + cast once

    out = jax.block_until_ready(positional_encoding_forward(x, pe_table))
    ref = x + pe_table[None, :S, :]
    assert out.shape == (B, S, D)
    assert jnp.allclose(out, ref, atol=1e-6), "mismatch (demo shape)"

    # Exercise the multi-step (megacore) grid path + batch tiling.
    B2, S2, D2 = 32, 64, 128
    x2 = jax.random.normal(jax.random.PRNGKey(1), (B2, S2, D2), dtype=jnp.float32)
    pe2 = _build_pe_table(D2, max_len)
    out2 = jax.block_until_ready(positional_encoding_forward(x2, pe2))
    ref2 = x2 + pe2[None, :S2, :]
    assert jnp.allclose(out2, ref2, atol=1e-6), "mismatch (tiled shape)"

    # Exercise partial (non-dividing) blocks on both grid axes.
    B3, S3, D3 = 3, 20, 64
    x3 = jax.random.normal(jax.random.PRNGKey(2), (B3, S3, D3), dtype=jnp.float32)
    pe3 = _build_pe_table(D3, max_len)
    out3 = jax.block_until_ready(positional_encoding_forward(x3, pe3, tb=2, ts=8))
    ref3 = x3 + pe3[None, :S3, :]
    assert jnp.allclose(out3, ref3, atol=1e-6), "mismatch (partial blocks)"

    print("KERNEL_OK")
</pallas_src>

<mosaic_0001>
module attributes {stable_mosaic.version = 11 : i64} {
  func.func @_pe_add_kernel(%arg0: i32, %arg1: i32, %arg2: memref<2x8x32xf32, #tpu.memory_space<vmem>>, %arg3: memref<8x32xf32, #tpu.memory_space<vmem>>, %arg4: memref<2x8x32xf32, #tpu.memory_space<vmem>>) attributes {dimension_semantics = [#tpu.dimension_semantics<parallel>, #tpu.dimension_semantics<parallel>], iteration_bounds = array<i64: 1, 1>, scalar_prefetch = 0 : i64, scratch_operands = 0 : i64, tpu.core_type = #tpu.core_type<tc>, window_params = [{transform_indices = @transform_0, window_bounds = array<i64: 2, 8, 32>}, {transform_indices = @transform_1, window_bounds = array<i64: 8, 32>}, {transform_indices = @transform_2, window_bounds = array<i64: 2, 8, 32>}]} {
    %c0 = arith.constant 0 : index
    %c0_0 = arith.constant 0 : index
    %c0_1 = arith.constant 0 : index
    %0 = vector.load %arg2[%c0, %c0_0, %c0_1] : memref<2x8x32xf32, #tpu.memory_space<vmem>>, vector<2x8x32xf32>
    %c0_2 = arith.constant 0 : index
    %c0_3 = arith.constant 0 : index
    %1 = vector.load %arg3[%c0_2, %c0_3] : memref<8x32xf32, #tpu.memory_space<vmem>>, vector<8x32xf32>
    %2 = vector.shape_cast %1 : vector<8x32xf32> to vector<1x8x32xf32>
    %3 = vector.broadcast %2 : vector<1x8x32xf32> to vector<2x8x32xf32>
    %4 = arith.addf %0, %3 : vector<2x8x32xf32>
    %c0_4 = arith.constant 0 : index
    %c0_5 = arith.constant 0 : index
    %c0_6 = arith.constant 0 : index
    %5 = vector.load %arg4[%c0_4, %c0_5, %c0_6] : memref<2x8x32xf32, #tpu.memory_space<vmem>>, vector<2x8x32xf32>
    tpu.vector_store %arg4[%c0_4, %c0_5, %c0_6], %4 {strides = array<i32>} : memref<2x8x32xf32, #tpu.memory_space<vmem>>, vector<2x8x32xf32>,
    return
  }
  func.func @transform_0(%arg0: i32, %arg1: i32) -> (i32, i32, i32) {
    %c0_i32 = arith.constant 0 : i32
    %c0_i32_0 = arith.constant 0 : i32
    return %arg0, %arg1, %c0_i32 : i32, i32, i32
  }
  func.func @transform_1(%arg0: i32, %arg1: i32) -> (i32, i32) {
    %c0_i32 = arith.constant 0 : i32
    %c0_i32_0 = arith.constant 0 : i32
    return %arg1, %c0_i32 : i32, i32
  }
  func.func @transform_2(%arg0: i32, %arg1: i32) -> (i32, i32, i32) {
    %c0_i32 = arith.constant 0 : i32
    %c0_i32_0 = arith.constant 0 : i32
    return %arg0, %arg1, %c0_i32 : i32, i32, i32
  }
}

</mosaic_0001>

<llo_original>
// kernel: tpu_custom_call.1
$region0: #{tpu_custom_call.1}
  #allocation0 [shape = 'u32[]', space=smem, size = 0x4, offset = 0x4, fixed_abs, tag = 'smem constant byte address 0x4 - core index']
  #allocation1 [shape = 'u32[72,128]{1,0:T(1,128)}', space=vmem, size = 0x9000, scoped, tag = 'internal scratch']
  %s0 = inlined_call_operand.hbm [shape: f32[2,8,32], index: 0, kind: input, shape index: {}]
  %s1 = inlined_call_operand.hbm [shape: f32[8,32], index: 1, kind: input, shape index: {}]
  %s2 = inlined_call_operand.hbm [shape: f32[2,8,32], index: 2, kind: output, shape index: {}]
  %s3 = sld [smem:[#allocation0]]
  $region26: #{tpu_custom_call.1} parent=0
    _
  %s5 = ssub.s32 1, %s3
  %s6 = scalar_select 0, %s5, %s3
  $region1: #{tpu_custom_call.1} parent=0
    #allocation2 [shape = 'u8[8192]{0}', space=vmem, size = 0x2000, scoped, tag = 'input window, operand 0, single buffered']
    #allocation3 [shape = 's32[1]{0}', space=sflag, size = 0x4, scoped, tag = 'scoped memory for tpu_custom_call.1']
    #allocation4 [shape = 's32[1]{0}', space=sflag, size = 0x4, scoped, tag = 'scoped memory for tpu_custom_call.1']
    #allocation5 [shape = 'u8[4096]{0}', space=vmem, size = 0x1000, scoped, tag = 'input window, operand 1, single buffered']
    #allocation6 [shape = 's32[1]{0}', space=sflag, size = 0x4, scoped, tag = 'scoped memory for tpu_custom_call.1']
    #allocation7 [shape = 'u8[8192]{0}', space=vmem, size = 0x2000, scoped, tag = 'output window, operand 0, single buffered']
    %7 = vsyncpa [#allocation3], 0
    %8 = vsyncpa [#allocation6], 0
    %9 = vsyncpa [#allocation4], 0
    // Predicated region
    $region2: #{tpu_custom_call.1} parent=1 // pred_check
      _
    $region3: #{tpu_custom_call.1} parent=1 // pred_check_branch
      %11 = sbr.rel (0) target = $region5
    $region4: #{tpu_custom_call.1} parent=1 // pred_region
      %13 = vsyncadd [#allocation3], 0
      %s14 = sshll.u32 %s0, 4
      %s15 = int_to_ptr.hbm [resolvable:$true] %s14
      %s16 = sshll.u32 [#allocation2], 4
      %s17 = int_to_ptr.vmem [resolvable:$true] %s16
      %22 = dma.hbm_to_vmem [thread:$0]  %s15, 256, %s17, [#allocation3], 128, 128, 8
    $region5: #{tpu_custom_call.1} parent=1 // pred_fallthru
      _
    // Predicated region
    $region6: #{tpu_custom_call.1} parent=1 // pred_check
      _
    $region7: #{tpu_custom_call.1} parent=1 // pred_check_branch
      %24 = sbr.rel (0) target = $region9
    $region8: #{tpu_custom_call.1} parent=1 // pred_region
      %26 = vsyncadd [#allocation6], 0
      %s28 = sshll.u32 %s1, 4
      %s29 = int_to_ptr.hbm [resolvable:$true] %s28
      %s30 = sshll.u32 [#allocation5], 4
      %s31 = int_to_ptr.vmem [resolvable:$true] %s30
      %33 = dma.hbm_to_vmem [thread:$0]  %s29, 128, %s31, [#allocation6]
    $region9: #{tpu_custom_call.1} parent=1 // pred_fallthru
      _
    // Predicated region
    $region10: #{tpu_custom_call.1} parent=1 // pred_check
      _
    $region11: #{tpu_custom_call.1} parent=1 // pred_check_branch
      %35 = sbr.rel (0) target = $region13
    $region12: #{tpu_custom_call.1} parent=1 // pred_region
      %37 = dma.done [#allocation3], 256
    $region13: #{tpu_custom_call.1} parent=1 // pred_fallthru
      _
    // Predicated region
    $region14: #{tpu_custom_call.1} parent=1 // pred_check
      _
    $region15: #{tpu_custom_call.1} parent=1 // pred_check_branch
      %39 = sbr.rel (0) target = $region17
    $region16: #{tpu_custom_call.1} parent=1 // pred_region
      %41 = dma.done [#allocation6], 128
    $region17: #{tpu_custom_call.1} parent=1 // pred_fallthru
      _
    %v42 = vld [vmem:[#allocation2] sm:$0xff]
    %v43 = vld [vmem:[#allocation2 + $0x8] sm:$0xff]
    %v44 = vld [vmem:[#allocation5] sm:$0xff]
    %v45 = vadd.f32 %v42, %v44
    %v46 = vadd.f32 %v43, %v44
    %vm47 = vcmask 261120
    %48 = vst.msk [vmem:[#allocation7] sm:$0xff] %vm47, %v45
    %49 = vst.msk [vmem:[#allocation7 + $0x8] sm:$0xff] %vm47, %v46
    // Predicated region
    $region18: #{tpu_custom_call.1} parent=1 // pred_check
      _
    $region19: #{tpu_custom_call.1} parent=1 // pred_check_branch
      %51 = sbr.rel (0) target = $region21
    $region20: #{tpu_custom_call.1} parent=1 // pred_region
      %53 = vsyncadd [#allocation4], 0
      %s54 = sshll.u32 [#allocation7], 4
      %s55 = int_to_ptr.vmem [resolvable:$true] %s54
      %s56 = sshll.u32 %s2, 4
      %s57 = int_to_ptr.hbm [resolvable:$true] %s56
      %62 = dma.vmem_to_hbm [thread:$0]  %s55, 256, %s57, [#allocation4], 128, 128, 8
    $region21: #{tpu_custom_call.1} parent=1 // pred_fallthru
      _
    // Predicated region
    $region22: #{tpu_custom_call.1} parent=1 // pred_check
      _
    $region23: #{tpu_custom_call.1} parent=1 // pred_check_branch
      %64 = sbr.rel (0) target = $region25
    $region24: #{tpu_custom_call.1} parent=1 // pred_region
      %66 = dma.done [#allocation4], 256
    $region25: #{tpu_custom_call.1} parent=1 // pred_fallthru
      _
    %67 = vsyncpa [#allocation3], 1
    %68 = vsyncpa [#allocation6], 1
    %69 = vsyncpa [#allocation4], 1

</llo_original>
